<compile_context>
chip_gen: v7x
topology: tpu7x:2x2x1
jax: 0.10.0
libtpu: 0.0.40
codegen_flags: <defaults>
</compile_context>

<pallas_src>
import functools

import jax
import jax.numpy as jnp
from jax.experimental import pallas as pl
from jax.experimental.pallas import tpu as pltpu

LANE = 128        # lane width: last-dim alignment
ROW_TILE = 16     # bf16 packed sublane tile: row alignment for activations
TM_CANDIDATES = (512, 256, 128, 64, 32, 16)


def _round_up(x, m):
    return ((x + m - 1) // m) * m


@functools.lru_cache(maxsize=1)
def _vmem_capacity_bytes():
    """Physical VMEM per TensorCore (128 MiB v5e/v6e, 64 MiB v7x)."""
    try:
        return int(pltpu.get_tpu_info().vmem_capacity_bytes)
    except Exception:
        return 64 << 20  # conservative fallback: safe on every generation


def _vmem_cap_bytes():
    # ~81% of physical VMEM: ~104 MiB on v5e/v6e (128 MiB), ~52 MiB on v7x.
    return max(32 << 20, (_vmem_capacity_bytes() * 13) // 16)


def _fused_mlp_kernel(x_ref, *refs, relu_flags):
    """Fused stack of Linear (+ optional ReLU) layers on one (TM, K) row tile.

    refs = (w0, b0, w1, b1, ..., o_ref).  Weights are bf16, biases f32,
    accumulation f32, intermediates stay in VMEM/vregs (never written to HBM).
    """
    num_layers = len(relu_flags)
    o_ref = refs[2 * num_layers]

    h = x_ref[...].astype(jnp.bfloat16)              # x may arrive f32 or bf16
    acc = None
    for l in range(num_layers):
        w_ref = refs[2 * l]
        b_ref = refs[2 * l + 1]
        acc = jnp.dot(h, w_ref[...], preferred_element_type=jnp.float32)
        acc = acc + b_ref[...]                       # (1, N) f32 bias, VPU broadcast
        if relu_flags[l]:
            acc = jnp.maximum(acc, 0.0)
        if l < num_layers - 1:
            h = acc.astype(jnp.bfloat16)             # feed next MXU matmul in bf16
    o_ref[...] = acc.astype(o_ref.dtype)


class PallasLinear:
    """One Linear (+ optional fused ReLU) layer, lane-padded to 128.

    Weights are stored zero-padded to (K_pad, N_pad) in bf16; biases zero-padded
    to (1, N_pad) in f32.  Zero padding keeps the math exact: padded columns
    stay exactly zero through bias + ReLU, and padded weight rows contribute 0.
    """
    # TODO(synk): offer an fp8(e4m3) resident-weight path on v7x (halves weight
    # VMEM, ~2x MXU) when accuracy allows; bf16 is kept here for all gens.

    def __init__(self, w, b, apply_relu=False):
        k, n = w.shape
        self.k, self.n = int(k), int(n)
        self.k_pad = _round_up(self.k, LANE)
        self.n_pad = _round_up(self.n, LANE)
        self.apply_relu = bool(apply_relu)

        w_p = jnp.zeros((self.k_pad, self.n_pad), jnp.float32).at[:k, :n].set(w)
        b_p = jnp.zeros((1, self.n_pad), jnp.float32).at[0, :n].set(b)
        self.w = w_p.astype(jnp.bfloat16)   # bf16 MXU path (v5e/v6e/v7x)
        self.b = b_p                        # keep f32 for the accumulate/add

    def weight_bytes(self):
        return self.k_pad * self.n_pad * 2 + self.n_pad * 4

    def __call__(self, x):
        return run_fused_linear_stack([self], x)


def _run_fused_chain(layers, x2, m, result_dtype):
    """One fused pallas_call over a chain of PallasLinear layers.

    x2: (m, feat) 2-D activation; returns (m, n_last) in result_dtype.
    """
    feat = int(x2.shape[1])
    k0p = layers[0].k_pad
    n_last, n_last_p = layers[-1].n, layers[-1].n_pad

    # --- Row tiling: pad M only to the bf16 sublane tile (16), pick tm that
    # divides it exactly (<1 tile of junk rows).
    m16 = _round_up(max(m, 1), ROW_TILE)
    tm = ROW_TILE
    for cand in TM_CANDIDATES:
        if m16 % cand == 0:
            tm = cand
            break
    # Guarantee >=2 grid steps when possible so the "parallel" axis can shard
    # across both v7x TensorCores (harmless single extra step on v5e/v6e).
    if m16 // tm == 1 and tm >= 2 * ROW_TILE:
        tm //= 2

    # --- Input: avoid any padded copy when the shape is already aligned.
    needs_in_pad = (m != m16) or (feat != k0p)
    if needs_in_pad:
        x_in = jnp.zeros((m16, k0p), jnp.bfloat16).at[:m, :feat].set(
            x2.astype(jnp.bfloat16))
    else:
        x_in = x2  # zero-copy; kernel casts each tile to bf16 on the VPU

    # --- Output: write bf16 when a slice-copy is needed anyway, else write the
    # caller's dtype directly (no extra HBM pass).
    out_needs_slice = (m != m16) or (n_last != n_last_p)
    out_dtype = jnp.bfloat16 if out_needs_slice else result_dtype

    # --- Generation-aware VMEM budget (includes live intermediates).
    x_bytes = jnp.dtype(x_in.dtype).itemsize
    o_bytes = jnp.dtype(out_dtype).itemsize
    max_np = max(l.n_pad for l in layers)
    w_bytes = sum(l.weight_bytes() for l in layers)

    def vmem_need(tm_):
        return (2 * tm_ * k0p * x_bytes           # double-buffered x tile
                + 2 * tm_ * n_last_p * o_bytes    # double-buffered out tile
                + 2 * tm_ * max_np * 4            # live f32 acc + bf16 intermediate
                + w_bytes)                        # resident weights + biases

    cap = _vmem_cap_bytes()
    while vmem_need(tm) > cap and tm > ROW_TILE:
        tm = max(ROW_TILE, tm // 2)
    # TODO(synk): if a single layer's weights alone exceed the VMEM cap, switch
    # to a K/N-tiled plan (pltpu.emit_pipeline over that layer, 256-wide tiles
    # on v6e/v7x, 128 on v5e) instead of full weight residency.

    grid = (m16 // tm,)
    in_specs = [pl.BlockSpec((tm, k0p), lambda i: (i, 0))]
    args = [x_in]
    for layer in layers:
        # Weights/biases stay VMEM-resident across all grid iterations.
        in_specs.append(pl.BlockSpec((layer.k_pad, layer.n_pad), lambda i: (0, 0)))
        in_specs.append(pl.BlockSpec((1, layer.n_pad), lambda i: (0, 0)))
        args.append(layer.w)
        args.append(layer.b)

    need = vmem_need(tm)
    vmem_limit = int(min(max(need * 3 // 2, 32 << 20), cap))

    flops = 2 * m16 * sum(l.k_pad * l.n_pad for l in layers)
    bytes_accessed = (m16 * k0p * x_bytes + w_bytes + m16 * n_last_p * o_bytes)

    kernel = functools.partial(
        _fused_mlp_kernel, relu_flags=tuple(l.apply_relu for l in layers))

    out = pl.pallas_call(
        kernel,
        out_shape=jax.ShapeDtypeStruct((m16, n_last_p), out_dtype),
        grid=grid,
        in_specs=in_specs,
        out_specs=pl.BlockSpec((tm, n_last_p), lambda i: (i, 0)),
        compiler_params=pltpu.CompilerParams(
            dimension_semantics=("parallel",),   # row tiles independent; 2x on v7x
            vmem_limit_bytes=vmem_limit,
        ),
        cost_estimate=pl.CostEstimate(
            flops=flops, transcendentals=0, bytes_accessed=bytes_accessed),
    )(*args)

    if out_needs_slice:
        # Padded rows/cols hold bias(+ReLU) garbage; slice them off here and
        # never expose the unsliced buffer.
        out = out[:m, :n_last]
    return out.astype(result_dtype)


def run_fused_linear_stack(layers, x):
    """Run a chain of PallasLinear layers as fused pallas_call(s).

    x: (..., K) float array; returns (..., N_last) in x's dtype.
    """
    assert len(layers) >= 1
    for a, b in zip(layers[:-1], layers[1:]):
        assert a.n == b.k, "consecutive Linear layers must chain"

    orig_shape = x.shape
    feat = int(orig_shape[-1])
    assert feat == layers[0].k
    m = 1
    for d in orig_shape[:-1]:
        m *= int(d)
    x2 = x.reshape(m, feat)
    result_dtype = x.dtype if jnp.issubdtype(x.dtype, jnp.floating) else jnp.float32

    # Split the chain into sub-chains whose resident weights fit ~half the
    # per-generation VMEM cap (intermediates between sub-chains go via HBM,
    # which is unavoidable at that size).
    budget = _vmem_cap_bytes() // 2
    chains, cur, cur_bytes = [], [], 0
    for layer in layers:
        lb = layer.weight_bytes()
        if cur and cur_bytes + lb > budget:
            chains.append(cur)
            cur, cur_bytes = [], 0
        cur.append(layer)
        cur_bytes += lb
    chains.append(cur)

    h = x2
    for chain in chains:
        h = _run_fused_chain(chain, h, m, result_dtype)

    n_last = layers[-1].n
    return h.reshape(*orig_shape[:-1], n_last)


class PallasModuleList:
    """JAX/Pallas equivalent of the SpeechBrain ModuleList wrapper.

    forward() applies the layers sequentially and unwraps tuple outputs,
    exactly like the PyTorch module.  As an optimization, runs of consecutive
    PallasLinear layers are fused into a single pallas_call (semantically
    identical: PallasLinear never returns a tuple).
    """

    def __init__(self, *layers):
        self.layers = list(layers)

    def forward(self, x):
        i = 0
        n = len(self.layers)
        while i < n:
            layer = self.layers[i]
            if isinstance(layer, PallasLinear):
                group = [layer]
                j = i + 1
                while (j < n and isinstance(self.layers[j], PallasLinear)
                       and self.layers[j].k == group[-1].n):
                    group.append(self.layers[j])
                    j += 1
                x = run_fused_linear_stack(group, x)
                i = j
            else:
                # TODO(synk): arbitrary torch layers inside the container have
                # no generic Pallas translation; they are called as-is here.
                x = layer(x)
                if isinstance(x, tuple):
                    x = x[0]
                i += 1
        return x

    __call__ = forward

    def append(self, module):
        self.layers.append(module)

    def extend(self, modules):
        self.layers.extend(modules)

    def insert(self, index, module):
        self.layers.insert(index, module)


if __name__ == "__main__":
    key = jax.random.PRNGKey(0)
    kx, k1, k2, k3, kb1, kb2, kb3 = jax.random.split(key, 7)

    # Small speech-like shapes: batch=2, time=8, features 32 -> 64 -> 64 -> 32
    B, T, D_IN, D_HID, D_OUT = 2, 8, 32, 64, 32

    x = jax.random.normal(kx, (B, T, D_IN), dtype=jnp.float32)

    w1 = jax.random.normal(k1, (D_IN, D_HID), dtype=jnp.float32) * 0.1
    b1 = jax.random.normal(kb1, (D_HID,), dtype=jnp.float32) * 0.01
    w2 = jax.random.normal(k2, (D_HID, D_HID), dtype=jnp.float32) * 0.1
    b2 = jax.random.normal(kb2, (D_HID,), dtype=jnp.float32) * 0.01
    w3 = jax.random.normal(k3, (D_HID, D_OUT), dtype=jnp.float32) * 0.1
    b3 = jax.random.normal(kb3, (D_OUT,), dtype=jnp.float32) * 0.01

    model = PallasModuleList(
        PallasLinear(w1, b1, apply_relu=True),   # Linear + ReLU fused
        PallasLinear(w2, b2, apply_relu=True),   # Linear + ReLU fused
        PallasLinear(w3, b3, apply_relu=False),  # final Linear
    )

    fwd = jax.jit(model.forward)
    out = jax.block_until_ready(fwd(x))

    # Reference with the same bf16-in / f32-accumulate precision policy.
    def ref_bf16(x):
        def lin(h, w, b, relu):
            y = jnp.dot(h.astype(jnp.bfloat16), w.astype(jnp.bfloat16),
                        preferred_element_type=jnp.float32) + b
            return jnp.maximum(y, 0.0) if relu else y
        h = lin(x, w1, b1, True)
        h = lin(h, w2, b2, True)
        return lin(h, w3, b3, False)

    def ref_f32(x):
        h = jnp.maximum(x @ w1 + b1, 0.0)
        h = jnp.maximum(h @ w2 + b2, 0.0)
        return h @ w3 + b3

    assert out.shape == (B, T, D_OUT)
    assert out.dtype == x.dtype
    # bf16 output writeback adds <=0.4% relative rounding on top of the bf16
    # matmul policy; tolerances cover both.
    assert jnp.allclose(out, ref_bf16(x), atol=2e-2, rtol=2e-2)
    assert jnp.allclose(out, ref_f32(x), atol=5e-2, rtol=5e-2)

    print("KERNEL_OK")
</pallas_src>

<mosaic_0001>
module attributes {stable_mosaic.version = 11 : i64} {
  func.func @_fused_mlp_kernel(%arg0: i32, %arg1: memref<16x128xbf16, #tpu.memory_space<vmem>>, %arg2: memref<128x128xbf16, #tpu.memory_space<vmem>>, %arg3: memref<1x128xf32, #tpu.memory_space<vmem>>, %arg4: memref<128x128xbf16, #tpu.memory_space<vmem>>, %arg5: memref<1x128xf32, #tpu.memory_space<vmem>>, %arg6: memref<128x128xbf16, #tpu.memory_space<vmem>>, %arg7: memref<1x128xf32, #tpu.memory_space<vmem>>, %arg8: memref<16x128xbf16, #tpu.memory_space<vmem>>) attributes {dimension_semantics = [#tpu.dimension_semantics<parallel>], iteration_bounds = array<i64: 1>, scalar_prefetch = 0 : i64, scratch_operands = 0 : i64, tpu.core_type = #tpu.core_type<tc>, window_params = [{transform_indices = @transform_0, window_bounds = array<i64: 16, 128>}, {pipeline_mode = #tpu.pipeline_mode<synchronous>, transform_indices = @transform_1, window_bounds = array<i64: 128, 128>}, {pipeline_mode = #tpu.pipeline_mode<synchronous>, transform_indices = @transform_2, window_bounds = array<i64: 1, 128>}, {pipeline_mode = #tpu.pipeline_mode<synchronous>, transform_indices = @transform_3, window_bounds = array<i64: 128, 128>}, {pipeline_mode = #tpu.pipeline_mode<synchronous>, transform_indices = @transform_4, window_bounds = array<i64: 1, 128>}, {pipeline_mode = #tpu.pipeline_mode<synchronous>, transform_indices = @transform_5, window_bounds = array<i64: 128, 128>}, {pipeline_mode = #tpu.pipeline_mode<synchronous>, transform_indices = @transform_6, window_bounds = array<i64: 1, 128>}, {transform_indices = @transform_7, window_bounds = array<i64: 16, 128>}]} {
    %c0 = arith.constant 0 : index
    %c0_0 = arith.constant 0 : index
    %0 = vector.load %arg1[%c0, %c0_0] : memref<16x128xbf16, #tpu.memory_space<vmem>>, vector<16x128xbf16>
    %c0_1 = arith.constant 0 : index
    %c0_2 = arith.constant 0 : index
    %1 = vector.load %arg2[%c0_1, %c0_2] : memref<128x128xbf16, #tpu.memory_space<vmem>>, vector<128x128xbf16>
    %cst = arith.constant dense<0.000000e+00> : vector<16x128xf32>
    %2 = tpu.matmul %0, %1, %cst {dimension_numbers = #tpu.dot_dimension_numbers<[1], [0], [0], [1], [0, 0, 1, 1], [], []>} : vector<16x128xbf16>, vector<128x128xbf16>, vector<16x128xf32> -> vector<16x128xf32>
    %c0_3 = arith.constant 0 : index
    %c0_4 = arith.constant 0 : index
    %3 = vector.load %arg3[%c0_3, %c0_4] : memref<1x128xf32, #tpu.memory_space<vmem>>, vector<1x128xf32>
    %4 = vector.broadcast %3 : vector<1x128xf32> to vector<16x128xf32>
    %5 = arith.addf %2, %4 : vector<16x128xf32>
    %cst_5 = arith.constant 0.000000e+00 : f32
    %6 = vector.broadcast %cst_5 : f32 to vector<16x128xf32>
    %7 = arith.maximumf %5, %6 : vector<16x128xf32>
    %8 = arith.truncf %7 : vector<16x128xf32> to vector<16x128xbf16>
    %c0_6 = arith.constant 0 : index
    %c0_7 = arith.constant 0 : index
    %9 = vector.load %arg4[%c0_6, %c0_7] : memref<128x128xbf16, #tpu.memory_space<vmem>>, vector<128x128xbf16>
    %cst_8 = arith.constant dense<0.000000e+00> : vector<16x128xf32>
    %10 = tpu.matmul %8, %9, %cst_8 {dimension_numbers = #tpu.dot_dimension_numbers<[1], [0], [0], [1], [0, 0, 1, 1], [], []>} : vector<16x128xbf16>, vector<128x128xbf16>, vector<16x128xf32> -> vector<16x128xf32>
    %c0_9 = arith.constant 0 : index
    %c0_10 = arith.constant 0 : index
    %11 = vector.load %arg5[%c0_9, %c0_10] : memref<1x128xf32, #tpu.memory_space<vmem>>, vector<1x128xf32>
    %12 = vector.broadcast %11 : vector<1x128xf32> to vector<16x128xf32>
    %13 = arith.addf %10, %12 : vector<16x128xf32>
    %cst_11 = arith.constant 0.000000e+00 : f32
    %14 = vector.broadcast %cst_11 : f32 to vector<16x128xf32>
    %15 = arith.maximumf %13, %14 : vector<16x128xf32>
    %16 = arith.truncf %15 : vector<16x128xf32> to vector<16x128xbf16>
    %c0_12 = arith.constant 0 : index
    %c0_13 = arith.constant 0 : index
    %17 = vector.load %arg6[%c0_12, %c0_13] : memref<128x128xbf16, #tpu.memory_space<vmem>>, vector<128x128xbf16>
    %cst_14 = arith.constant dense<0.000000e+00> : vector<16x128xf32>
    %18 = tpu.matmul %16, %17, %cst_14 {dimension_numbers = #tpu.dot_dimension_numbers<[1], [0], [0], [1], [0, 0, 1, 1], [], []>} : vector<16x128xbf16>, vector<128x128xbf16>, vector<16x128xf32> -> vector<16x128xf32>
    %c0_15 = arith.constant 0 : index
    %c0_16 = arith.constant 0 : index
    %19 = vector.load %arg7[%c0_15, %c0_16] : memref<1x128xf32, #tpu.memory_space<vmem>>, vector<1x128xf32>
    %20 = vector.broadcast %19 : vector<1x128xf32> to vector<16x128xf32>
    %21 = arith.addf %18, %20 : vector<16x128xf32>
    %22 = arith.truncf %21 : vector<16x128xf32> to vector<16x128xbf16>
    %c0_17 = arith.constant 0 : index
    %c0_18 = arith.constant 0 : index
    %23 = vector.load %arg8[%c0_17, %c0_18] : memref<16x128xbf16, #tpu.memory_space<vmem>>, vector<16x128xbf16>
    tpu.vector_store %arg8[%c0_17, %c0_18], %22 {strides = array<i32>} : memref<16x128xbf16, #tpu.memory_space<vmem>>, vector<16x128xbf16>,
    return
  }
  func.func @transform_0(%arg0: i32) -> (i32, i32) {
    %c0_i32 = arith.constant 0 : i32
    %c0_i32_0 = arith.constant 0 : i32
    return %arg0, %c0_i32 : i32, i32
  }
  func.func @transform_1(%arg0: i32) -> (i32, i32) {
    %c0_i32 = arith.constant 0 : i32
    %c0_i32_0 = arith.constant 0 : i32
    %c0_i32_1 = arith.constant 0 : i32
    return %c0_i32, %c0_i32_0 : i32, i32
  }
  func.func @transform_2(%arg0: i32) -> (i32, i32) {
    %c0_i32 = arith.constant 0 : i32
    %c0_i32_0 = arith.constant 0 : i32
    %c0_i32_1 = arith.constant 0 : i32
    return %c0_i32, %c0_i32_0 : i32, i32
  }
  func.func @transform_3(%arg0: i32) -> (i32, i32) {
    %c0_i32 = arith.constant 0 : i32
    %c0_i32_0 = arith.constant 0 : i32
    %c0_i32_1 = arith.constant 0 : i32
    return %c0_i32, %c0_i32_0 : i32, i32
  }
  func.func @transform_4(%arg0: i32) -> (i32, i32) {
    %c0_i32 = arith.constant 0 : i32
    %c0_i32_0 = arith.constant 0 : i32
    %c0_i32_1 = arith.constant 0 : i32
    return %c0_i32, %c0_i32_0 : i32, i32
  }
  func.func @transform_5(%arg0: i32) -> (i32, i32) {
    %c0_i32 = arith.constant 0 : i32
    %c0_i32_0 = arith.constant 0 : i32
    %c0_i32_1 = arith.constant 0 : i32
    return %c0_i32, %c0_i32_0 : i32, i32
  }
  func.func @transform_6(%arg0: i32) -> (i32, i32) {
    %c0_i32 = arith.constant 0 : i32
    %c0_i32_0 = arith.constant 0 : i32
    %c0_i32_1 = arith.constant 0 : i32
    return %c0_i32, %c0_i32_0 : i32, i32
  }
  func.func @transform_7(%arg0: i32) -> (i32, i32) {
    %c0_i32 = arith.constant 0 : i32
    %c0_i32_0 = arith.constant 0 : i32
    return %arg0, %c0_i32 : i32, i32
  }
}

</mosaic_0001>

<llo_original>
// kernel: forward.1
$region0: #{forward.1}
  #allocation0 [shape = 'u32[]', space=smem, size = 0x4, offset = 0x4, fixed_abs, tag = 'smem constant byte address 0x4 - core index']
  #allocation1 [shape = 'u32[144,128]{1,0:T(1,128)}', space=vmem, size = 0x12000, scoped, tag = 'internal scratch']
  %s0 = inlined_call_operand.vmem [shape: bf16[16,128], index: 0, kind: input, shape index: {}]
  %s1 = inlined_call_operand.hbm [shape: bf16[128,128], index: 1, kind: input, shape index: {}]
  %s2 = inlined_call_operand.vmem [shape: f32[1,128], index: 2, kind: input, shape index: {}]
  %s3 = inlined_call_operand.hbm [shape: bf16[128,128], index: 3, kind: input, shape index: {}]
  %s4 = inlined_call_operand.vmem [shape: f32[1,128], index: 4, kind: input, shape index: {}]
  %s5 = inlined_call_operand.vmem [shape: bf16[128,128], index: 5, kind: input, shape index: {}]
  %s6 = inlined_call_operand.vmem [shape: f32[1,128], index: 6, kind: input, shape index: {}]
  %s7 = inlined_call_operand.vmem [shape: bf16[16,128], index: 7, kind: output, shape index: {}]
  %s8 = sld [smem:[#allocation0]]
  $region46: #{forward.1} parent=0
    _
  %s10 = ssub.s32 1, %s8
  %s11 = scalar_select 0, %s10, %s8
  $region1: #{forward.1} parent=0
    #allocation2 [shape = 'u8[32768]{0}', space=vmem, size = 0x8000, scoped, tag = 'input window, operand 1, single buffered']
    #allocation3 [shape = 's32[1]{0}', space=sflag, size = 0x4, scoped, tag = 'scoped memory for forward.1']
    #allocation4 [shape = 'u8[32768]{0}', space=vmem, size = 0x8000, scoped, tag = 'input window, operand 3, single buffered']
    #allocation5 [shape = 's32[1]{0}', space=sflag, size = 0x4, scoped, tag = 'scoped memory for forward.1']
    %12 = vsyncpa [#allocation3], 0
    %13 = vsyncpa [#allocation5], 0
    // Predicated region
    $region2: #{forward.1} parent=1 // pred_check
      _
    $region3: #{forward.1} parent=1 // pred_check_branch
      %15 = sbr.rel (0) target = $region5
    $region4: #{forward.1} parent=1 // pred_region
      _
    $region5: #{forward.1} parent=1 // pred_fallthru
      _
    // Predicated region
    $region6: #{forward.1} parent=1 // pred_check
      _
    $region7: #{forward.1} parent=1 // pred_check_branch
      %17 = sbr.rel (0) target = $region9
    $region8: #{forward.1} parent=1 // pred_region
      %s19 = ssub.s32 1024, 1024
      %20 = vsyncadd [#allocation3], %s19
      %s21 = sshll.u32 [#allocation2], 4
      %s22 = int_to_ptr.vmem [resolvable:$true] %s21
      %27 = dma.hbm_to_vmem [thread:$0]  %s1, 1024, %s22, [#allocation3], 64, 64, 4
    $region9: #{forward.1} parent=1 // pred_fallthru
      _
    // Predicated region
    $region10: #{forward.1} parent=1 // pred_check
      _
    $region11: #{forward.1} parent=1 // pred_check_branch
      %29 = sbr.rel (0) target = $region13
    $region12: #{forward.1} parent=1 // pred_region
      _
    $region13: #{forward.1} parent=1 // pred_fallthru
      _
    // Predicated region
    $region14: #{forward.1} parent=1 // pred_check
      _
    $region15: #{forward.1} parent=1 // pred_check_branch
      %31 = sbr.rel (0) target = $region17
    $region16: #{forward.1} parent=1 // pred_region
      %s33 = ssub.s32 1024, 1024
      %34 = vsyncadd [#allocation5], %s33
      %s35 = sshll.u32 [#allocation4], 4
      %s36 = int_to_ptr.vmem [resolvable:$true] %s35
      %41 = dma.hbm_to_vmem [thread:$0]  %s3, 1024, %s36, [#allocation5], 64, 64, 4
    $region17: #{forward.1} parent=1 // pred_fallthru
      _
    // Predicated region
    $region18: #{forward.1} parent=1 // pred_check
      _
    $region19: #{forward.1} parent=1 // pred_check_branch
      %43 = sbr.rel (0) target = $region21
    $region20: #{forward.1} parent=1 // pred_region
      _
    $region21: #{forward.1} parent=1 // pred_fallthru
      _
    // Predicated region
    $region22: #{forward.1} parent=1 // pred_check
      _
    $region23: #{forward.1} parent=1 // pred_check_branch
      %45 = sbr.rel (0) target = $region25
    $region24: #{forward.1} parent=1 // pred_region
      _
    $region25: #{forward.1} parent=1 // pred_fallthru
      _
    // Predicated region
    $region26: #{forward.1} parent=1 // pred_check
      _
    $region27: #{forward.1} parent=1 // pred_check_branch
      %47 = sbr.rel (0) target = $region29
    $region28: #{forward.1} parent=1 // pred_region
      _
    $region29: #{forward.1} parent=1 // pred_fallthru
      _
    // Predicated region
    $region30: #{forward.1} parent=1 // pred_check
      _
    $region31: #{forward.1} parent=1 // pred_check_branch
      %49 = sbr.rel (0) target = $region33
    $region32: #{forward.1} parent=1 // pred_region
      %50 = dma.done [#allocation3], 1024
    $region33: #{forward.1} parent=1 // pred_fallthru
      _
    // Predicated region
    $region34: #{forward.1} parent=1 // pred_check
      _
    $region35: #{forward.1} parent=1 // pred_check_branch
      %52 = sbr.rel (0) target = $region37
    $region36: #{forward.1} parent=1 // pred_region
      %53 = dma.done [#allocation5], 1024
    $region37: #{forward.1} parent=1 // pred_fallthru
      _
    %v55 = vld [vmem:[%s0] sm:$0xf]
    %v56 = vld [vmem:[%s0 + $0x4] sm:$0xf]
    %v57 = vld [vmem:[#allocation2] sm:$0xf]
    %v58 = vld [vmem:[#allocation2 + $0x4] sm:$0xf]
    %v59 = vld [vmem:[#allocation2 + $0x8] sm:$0xf]
    %v60 = vld [vmem:[#allocation2 + $0xc] sm:$0xf]
    %v61 = vld [vmem:[#allocation2 + $0x10] sm:$0xf]
    %v62 = vld [vmem:[#allocation2 + $0x14] sm:$0xf]
    %v63 = vld [vmem:[#allocation2 + $0x18] sm:$0xf]
    %v64 = vld [vmem:[#allocation2 + $0x1c] sm:$0xf]
    %v65 = vld [vmem:[#allocation2 + $0x20] sm:$0xf]
    %v66 = vld [vmem:[#allocation2 + $0x24] sm:$0xf]
    %v67 = vld [vmem:[#allocation2 + $0x28] sm:$0xf]
    %v68 = vld [vmem:[#allocation2 + $0x2c] sm:$0xf]
    %v69 = vld [vmem:[#allocation2 + $0x30] sm:$0xf]
    %v70 = vld [vmem:[#allocation2 + $0x34] sm:$0xf]
    %v71 = vld [vmem:[#allocation2 + $0x38] sm:$0xf]
    %v72 = vld [vmem:[#allocation2 + $0x3c] sm:$0xf]
    %v73 = vld [vmem:[%s2] sm:$0x1]
    %v75 = vlaneseq
    %v76 = vshrl.u32 %v75, 7
    %v77 = vsub.s32 0, %v76
    %v78 = vrot.slane %v73, %v77
    %v82 = vunpack.c.l.b16 %v55
    %v83 = vunpack.c.l.b16 %v56
    %v84 = vpack.c.b16 %v83, %v82
    %v102 = vunpack.c.l.b16 %v57
    %v103 = vunpack.c.l.b16 %v58
    %v104 = vunpack.c.l.b16 %v59
    %v105 = vunpack.c.l.b16 %v60
    %v106 = vunpack.c.l.b16 %v61
    %v107 = vunpack.c.l.b16 %v62
    %v108 = vunpack.c.l.b16 %v63
    %v109 = vunpack.c.l.b16 %v64
    %v110 = vunpack.c.l.b16 %v65
    %v111 = vunpack.c.l.b16 %v66
    %v112 = vunpack.c.l.b16 %v67
    %v113 = vunpack.c.l.b16 %v68
    %v114 = vunpack.c.l.b16 %v69
    %v115 = vunpack.c.l.b16 %v70
    %v116 = vunpack.c.l.b16 %v71
    %v117 = vunpack.c.l.b16 %v72
    %v118 = vpack.c.b16 %v103, %v102
    %v119 = vpack.c.b16 %v105, %v104
    %v120 = vpack.c.b16 %v107, %v106
    %v121 = vpack.c.b16 %v109, %v108
    %v122 = vpack.c.b16 %v111, %v110
    %v123 = vpack.c.b16 %v113, %v112
    %v124 = vpack.c.b16 %v115, %v114
    %v125 = vpack.c.b16 %v117, %v116
    %134 = vmatprep.subr.bf16.mxu0 0
    %135 = vmatpush1.bf16.msra.mxu0 %v118
    %136 = vmatprep.subr.bf16.mxu0 0
    %137 = vmatpush1.bf16.msra.mxu0 %v119
    %138 = vmatprep.subr.bf16.mxu0 0
    %139 = vmatpush1.bf16.msra.mxu0 %v120
    %140 = vmatprep.subr.bf16.mxu0 0
    %141 = vmatpush1.bf16.msra.mxu0 %v121
    %142 = vmatprep.subr.bf16.mxu0 0
    %143 = vmatpush1.bf16.msra.mxu0 %v122
    %144 = vmatprep.subr.bf16.mxu0 0
    %145 = vmatpush1.bf16.msra.mxu0 %v123
    %146 = vmatprep.subr.bf16.mxu0 0
    %147 = vmatpush1.bf16.msra.mxu0 %v124
    %148 = vmatprep.subr.bf16.mxu0 0
    %149 = vmatpush1.bf16.msra.mxu0 %v125
    %150 = vmatprep.subr.bf16.mxu0 0
    %151 = vmatpush1.bf16.msra.mxu0 0
    %152 = vmatprep.subr.bf16.mxu0 0
    %153 = vmatpush1.bf16.msra.mxu0 0
    %154 = vmatprep.subr.bf16.mxu0 0
    %155 = vmatpush1.bf16.msra.mxu0 0
    %156 = vmatprep.subr.bf16.mxu0 0
    %157 = vmatpush1.bf16.msra.mxu0 0
    %158 = vmatprep.subr.bf16.mxu0 0
    %159 = vmatpush1.bf16.msra.mxu0 0
    %160 = vmatprep.subr.bf16.mxu0 0
    %161 = vmatpush1.bf16.msra.mxu0 0
    %162 = vmatprep.subr.bf16.mxu0 0
    %163 = vmatpush1.bf16.msra.mxu0 0
    %164 = vmatprep.subr.bf16.mxu0 0
    %165 = vmatpush1.bf16.msra.mxu0 0
    %166 = vmatprep.mubr.bf16.mxu0 0
    %167 = vmatmul.mubr.bf16.gmra.mrb[0].mxu0 %v84
    %v168 = vpop.f32.mrb[0].mxu0
    %v169 = vadd.f32 %v78, %v168
    %v170 = vpop.f32.mrb[0].mxu0
    %v171 = vpop.f32.mrb[0].mxu0
    %v172 = vadd.f32 %v78, %v171
    %v173 = vpop.f32.mrb[0].mxu0
    %174 = vdwg.mxu0
    %v175 = vmax.f32 %v169, 0.0
    %v176 = vmax.f32 %v172, 0.0
    %v177 = vpack.c.bf16 %v176, %v175
    %v178 = vld [vmem:[#allocation4] sm:$0xf]
    %v179 = vld [vmem:[#allocation4 + $0x4] sm:$0xf]
    %v180 = vld [vmem:[#allocation4 + $0x8] sm:$0xf]
    %v181 = vld [vmem:[#allocation4 + $0xc] sm:$0xf]
    %v182 = vld [vmem:[#allocation4 + $0x10] sm:$0xf]
    %v183 = vld [vmem:[#allocation4 + $0x14] sm:$0xf]
    %v184 = vld [vmem:[#allocation4 + $0x18] sm:$0xf]
    %v185 = vld [vmem:[#allocation4 + $0x1c] sm:$0xf]
    %v186 = vld [vmem:[#allocation4 + $0x20] sm:$0xf]
    %v187 = vld [vmem:[#allocation4 + $0x24] sm:$0xf]
    %v188 = vld [vmem:[#allocation4 + $0x28] sm:$0xf]
    %v189 = vld [vmem:[#allocation4 + $0x2c] sm:$0xf]
    %v190 = vld [vmem:[#allocation4 + $0x30] sm:$0xf]
    %v191 = vld [vmem:[#allocation4 + $0x34] sm:$0xf]
    %v192 = vld [vmem:[#allocation4 + $0x38] sm:$0xf]
    %v193 = vld [vmem:[#allocation4 + $0x3c] sm:$0xf]
    %v194 = vld [vmem:[%s4] sm:$0x1]
    %v196 = vlaneseq
    %v197 = vshrl.u32 %v196, 7
    %v198 = vsub.s32 0, %v197
    %v199 = vrot.slane %v194, %v198
    %v217 = vunpack.c.l.b16 %v178
    %v218 = vunpack.c.l.b16 %v179
    %v219 = vunpack.c.l.b16 %v180
    %v220 = vunpack.c.l.b16 %v181
    %v221 = vunpack.c.l.b16 %v182
    %v222 = vunpack.c.l.b16 %v183
    %v223 = vunpack.c.l.b16 %v184
    %v224 = vunpack.c.l.b16 %v185
    %v225 = vunpack.c.l.b16 %v186
    %v226 = vunpack.c.l.b16 %v187
    %v227 = vunpack.c.l.b16 %v188
    %v228 = vunpack.c.l.b16 %v189
    %v229 = vunpack.c.l.b16 %v190
    %v230 = vunpack.c.l.b16 %v191
    %v231 = vunpack.c.l.b16 %v192
    %v232 = vunpack.c.l.b16 %v193
    %v233 = vpack.c.b16 %v218, %v217
    %v234 = vpack.c.b16 %v220, %v219
    %v235 = vpack.c.b16 %v222, %v221
    %v236 = vpack.c.b16 %v224, %v223
    %v237 = vpack.c.b16 %v226, %v225
    %v238 = vpack.c.b16 %v228, %v227
    %v239 = vpack.c.b16 %v230, %v229
    %v240 = vpack.c.b16 %v232, %v231
    %249 = vmatprep.subr.bf16.mxu0 0
    %250 = vmatpush1.bf16.msra.mxu0 %v233
    %251 = vmatprep.subr.bf16.mxu0 0
    %252 = vmatpush1.bf16.msra.mxu0 %v234
    %253 = vmatprep.subr.bf16.mxu0 0
    %254 = vmatpush1.bf16.msra.mxu0 %v235
    %255 = vmatprep.subr.bf16.mxu0 0
    %256 = vmatpush1.bf16.msra.mxu0 %v236
    %257 = vmatprep.subr.bf16.mxu0 0
    %258 = vmatpush1.bf16.msra.mxu0 %v237
    %259 = vmatprep.subr.bf16.mxu0 0
    %260 = vmatpush1.bf16.msra.mxu0 %v238
    %261 = vmatprep.subr.bf16.mxu0 0
    %262 = vmatpush1.bf16.msra.mxu0 %v239
    %263 = vmatprep.subr.bf16.mxu0 0
    %264 = vmatpush1.bf16.msra.mxu0 %v240
    %265 = vmatprep.subr.bf16.mxu0 0
    %266 = vmatpush1.bf16.msra.mxu0 0
    %267 = vmatprep.subr.bf16.mxu0 0
    %268 = vmatpush1.bf16.msra.mxu0 0
    %269 = vmatprep.subr.bf16.mxu0 0
    %270 = vmatpush1.bf16.msra.mxu0 0
    %271 = vmatprep.subr.bf16.mxu0 0
    %272 = vmatpush1.bf16.msra.mxu0 0
    %273 = vmatprep.subr.bf16.mxu0 0
    %274 = vmatpush1.bf16.msra.mxu0 0
    %275 = vmatprep.subr.bf16.mxu0 0
    %276 = vmatpush1.bf16.msra.mxu0 0
    %277 = vmatprep.subr.bf16.mxu0 0
    %278 = vmatpush1.bf16.msra.mxu0 0
    %279 = vmatprep.subr.bf16.mxu0 0
    %280 = vmatpush1.bf16.msra.mxu0 0
    %281 = vmatprep.mubr.bf16.mxu0 0
    %282 = vmatmul.mubr.bf16.gmra.mrb[0].mxu0 %v177
    %v283 = vpop.f32.mrb[0].mxu0
    %v284 = vadd.f32 %v199, %v283
    %v285 = vpop.f32.mrb[0].mxu0
    %v286 = vpop.f32.mrb[0].mxu0
    %v287 = vadd.f32 %v199, %v286
    %v288 = vpop.f32.mrb[0].mxu0
    %289 = vdwg.mxu0
    %v290 = vmax.f32 %v284, 0.0
    %v291 = vmax.f32 %v287, 0.0
    %v292 = vpack.c.bf16 %v291, %v290
    %v293 = vld [vmem:[%s5] sm:$0xf]
    %v294 = vld [vmem:[%s5 + $0x4] sm:$0xf]
    %v295 = vld [vmem:[%s5 + $0x8] sm:$0xf]
    %v296 = vld [vmem:[%s5 + $0xc] sm:$0xf]
    %v297 = vld [vmem:[%s5 + $0x10] sm:$0xf]
    %v298 = vld [vmem:[%s5 + $0x14] sm:$0xf]
    %v299 = vld [vmem:[%s5 + $0x18] sm:$0xf]
    %v300 = vld [vmem:[%s5 + $0x1c] sm:$0xf]
    %v301 = vld [vmem:[%s5 + $0x20] sm:$0xf]
    %v302 = vld [vmem:[%s5 + $0x24] sm:$0xf]
    %v303 = vld [vmem:[%s5 + $0x28] sm:$0xf]
    %v304 = vld [vmem:[%s5 + $0x2c] sm:$0xf]
    %v305 = vld [vmem:[%s5 + $0x30] sm:$0xf]
    %v306 = vld [vmem:[%s5 + $0x34] sm:$0xf]
    %v307 = vld [vmem:[%s5 + $0x38] sm:$0xf]
    %v308 = vld [vmem:[%s5 + $0x3c] sm:$0xf]
    %v309 = vld [vmem:[%s6] sm:$0x1]
    %v311 = vlaneseq
    %v312 = vshrl.u32 %v311, 7
    %v313 = vsub.s32 0, %v312
    %v314 = vrot.slane %v309, %v313
    %v332 = vunpack.c.l.b16 %v293
    %v333 = vunpack.c.l.b16 %v294
    %v334 = vunpack.c.l.b16 %v295
    %v335 = vunpack.c.l.b16 %v296
    %v336 = vunpack.c.l.b16 %v297
    %v337 = vunpack.c.l.b16 %v298
    %v338 = vunpack.c.l.b16 %v299
    %v339 = vunpack.c.l.b16 %v300
    %v340 = vunpack.c.l.b16 %v301
    %v341 = vunpack.c.l.b16 %v302
    %v342 = vunpack.c.l.b16 %v303
    %v343 = vunpack.c.l.b16 %v304
    %v344 = vunpack.c.l.b16 %v305
    %v345 = vunpack.c.l.b16 %v306
    %v346 = vunpack.c.l.b16 %v307
    %v347 = vunpack.c.l.b16 %v308
    %v348 = vpack.c.b16 %v333, %v332
    %v349 = vpack.c.b16 %v335, %v334
    %v350 = vpack.c.b16 %v337, %v336
    %v351 = vpack.c.b16 %v339, %v338
    %v352 = vpack.c.b16 %v341, %v340
    %v353 = vpack.c.b16 %v343, %v342
    %v354 = vpack.c.b16 %v345, %v344
    %v355 = vpack.c.b16 %v347, %v346
    %364 = vmatprep.subr.bf16.mxu0 0
    %365 = vmatpush1.bf16.msra.mxu0 %v348
    %366 = vmatprep.subr.bf16.mxu0 0
    %367 = vmatpush1.bf16.msra.mxu0 %v349
    %368 = vmatprep.subr.bf16.mxu0 0
    %369 = vmatpush1.bf16.msra.mxu0 %v350
    %370 = vmatprep.subr.bf16.mxu0 0
    %371 = vmatpush1.bf16.msra.mxu0 %v351
    %372 = vmatprep.subr.bf16.mxu0 0
    %373 = vmatpush1.bf16.msra.mxu0 %v352
    %374 = vmatprep.subr.bf16.mxu0 0
    %375 = vmatpush1.bf16.msra.mxu0 %v353
    %376 = vmatprep.subr.bf16.mxu0 0
    %377 = vmatpush1.bf16.msra.mxu0 %v354
    %378 = vmatprep.subr.bf16.mxu0 0
    %379 = vmatpush1.bf16.msra.mxu0 %v355
    %380 = vmatprep.subr.bf16.mxu0 0
    %381 = vmatpush1.bf16.msra.mxu0 0
    %382 = vmatprep.subr.bf16.mxu0 0
    %383 = vmatpush1.bf16.msra.mxu0 0
    %384 = vmatprep.subr.bf16.mxu0 0
    %385 = vmatpush1.bf16.msra.mxu0 0
    %386 = vmatprep.subr.bf16.mxu0 0
    %387 = vmatpush1.bf16.msra.mxu0 0
    %388 = vmatprep.subr.bf16.mxu0 0
    %389 = vmatpush1.bf16.msra.mxu0 0
    %390 = vmatprep.subr.bf16.mxu0 0
    %391 = vmatpush1.bf16.msra.mxu0 0
    %392 = vmatprep.subr.bf16.mxu0 0
    %393 = vmatpush1.bf16.msra.mxu0 0
    %394 = vmatprep.subr.bf16.mxu0 0
    %395 = vmatpush1.bf16.msra.mxu0 0
    %396 = vmatprep.mubr.bf16.mxu0 0
    %397 = vmatmul.mubr.bf16.gmra.mrb[0].mxu0 %v292
    %v398 = vpop.f32.mrb[0].mxu0
    %v399 = vadd.f32 %v314, %v398
    %v400 = vpop.f32.mrb[0].mxu0
    %v401 = vpop.f32.mrb[0].mxu0
    %v402 = vadd.f32 %v314, %v401
    %v403 = vpop.f32.mrb[0].mxu0
    %404 = vdwg.mxu0
    %v405 = vpack.c.bf16 %v402, %v399
    %v407 = vunpack.c.l.b16 %v405
    %v408 = vunpack.c.h.b16 %v405
    %v409 = vpack.c.b16 %v407, %v407
    %v410 = vpack.c.b16 %v408, %v408
    %413 = vst [vmem:[%s7] sm:$0xf] %v409
    %414 = vst [vmem:[%s7 + $0x4] sm:$0xf] %v410
    // Predicated region
    $region38: #{forward.1} parent=1 // pred_check
      _
    $region39: #{forward.1} parent=1 // pred_check_branch
      %416 = sbr.rel (0) target = $region41
    $region40: #{forward.1} parent=1 // pred_region
      _
    $region41: #{forward.1} parent=1 // pred_fallthru
      _
    // Predicated region
    $region42: #{forward.1} parent=1 // pred_check
      _
    $region43: #{forward.1} parent=1 // pred_check_branch
      %418 = sbr.rel (0) target = $region45
    $region44: #{forward.1} parent=1 // pred_region
      _
    $region45: #{forward.1} parent=1 // pred_fallthru
      _
    %419 = vsyncpa [#allocation3], 1
    %420 = vsyncpa [#allocation5], 1

</llo_original>
